<compile_context>
chip_gen: v7x
topology: tpu7x:2x2x1
jax: 0.10.0
libtpu: 0.0.40
codegen_flags: <defaults>
</compile_context>

<pallas_src>
import functools

import jax
import jax.numpy as jnp
from jax import lax
from jax.experimental import pallas as pl
from jax.experimental.pallas import tpu as pltpu


HIDDEN = 768       # wav2vec2-base hidden size
MLP = 256          # classifier hidden size
NUM_CLASSES = 4    # num_classes for the synthetic example
LANE = 128


def _round_up(x, m):
    return (x + m - 1) // m * m


def emotion_classifier_kernel(h_ref, w1_ref, b1_ref, w2_ref, b2_ref, o_ref,
                              acc_ref, *, seq_len, t_tile):
    """Streaming temporal-sum reduction + fused classifier head.

    grid = (batch_tile, time_tile); time is the (last) reduction axis.
    acc_ref: (B_TILE, HIDDEN) f32 running temporal sum, resident across time.
    """
    t = pl.program_id(1)
    nt = pl.num_programs(1)

    @pl.when(t == 0)
    def _():
        acc_ref[...] = jnp.zeros_like(acc_ref)

    h = h_ref[...]                                     # (B_TILE, T_TILE, D) bf16
    if seq_len % t_tile != 0:
        # Mask out padded rows of the final (partial) time tile.
        time_idx = lax.broadcasted_iota(jnp.int32, (1, t_tile, 1), 1)
        valid = seq_len - t * t_tile
        h = jnp.where(time_idx < valid, h, jnp.zeros_like(h))
    # Accumulate in float32 (bf16 sums over hundreds of frames lose precision).
    acc_ref[...] += jnp.sum(h, axis=1, dtype=jnp.float32)

    @pl.when(t == nt - 1)
    def _():
        feats = acc_ref[...] * (1.0 / seq_len)                         # mean over time
        z = jnp.dot(feats, w1_ref[...], preferred_element_type=jnp.float32)
        z = jnp.maximum(z + b1_ref[...], 0.0)                          # ReLU (VPU)
        logits = jnp.dot(z, w2_ref[...], preferred_element_type=jnp.float32)
        o_ref[...] = (logits + b2_ref[...]).astype(o_ref.dtype)


def emotion_classifier(hidden_states, w1, b1, w2, b2, *, t_tile=512):
    """hidden_states: (B, T, 768). Returns logits (B, num_classes), float32."""
    B, T, D = hidden_states.shape
    assert D == HIDDEN
    C = w2.shape[1]

    # Stream the big input as bf16 (kernel is purely HBM-bandwidth bound).
    h = hidden_states.astype(jnp.bfloat16)

    # Lane-dense classifier head: zero-pad num_classes up to a multiple of 128.
    c_pad = _round_up(C, LANE)
    w1f = w1.astype(jnp.float32)
    b1r = b1.reshape(1, MLP).astype(jnp.float32)
    w2p = jnp.zeros((MLP, c_pad), jnp.float32).at[:, :C].set(w2.astype(jnp.float32))
    b2p = jnp.zeros((1, c_pad), jnp.float32).at[:, :C].set(
        b2.reshape(1, C).astype(jnp.float32))

    # Time tile: full axis if short, else a multiple of 8 sublanes.
    # (B_TILE=8, T_TILE=512 bf16 block = 6.3 MiB; x2 buffers ~12.6 MiB — fits
    #  v5e/v6e/v7x scoped VMEM with the explicit 32 MiB limit below.)
    T_TILE = T if T <= t_tile else max(8, (t_tile // 8) * 8)
    # Batch tile: keep the 2-D output block legal under the (8,128) rule.
    B_TILE = 8 if (B % 8 == 0) else B
    grid = (B // B_TILE, pl.cdiv(T, T_TILE))

    kernel = functools.partial(emotion_classifier_kernel,
                               seq_len=T, t_tile=T_TILE)

    cost = pl.CostEstimate(
        flops=2 * B * (HIDDEN * MLP + MLP * c_pad) + B * T * HIDDEN,
        transcendentals=0,
        bytes_accessed=B * T * HIDDEN * 2                      # bf16 hidden states
        + (HIDDEN * MLP + MLP + MLP * c_pad + c_pad) * 4       # f32 params
        + B * c_pad * 4,                                       # f32 logits
    )

    out = pl.pallas_call(
        kernel,
        out_shape=jax.ShapeDtypeStruct((B, c_pad), jnp.float32),
        grid_spec=pltpu.PrefetchScalarGridSpec(
            num_scalar_prefetch=0,
            grid=grid,
            in_specs=[
                # hidden states: stream over (batch, time)
                pl.BlockSpec((B_TILE, T_TILE, HIDDEN), lambda b, t: (b, t, 0)),
                # weights/biases: constant block index -> stay VMEM-resident
                pl.BlockSpec((HIDDEN, MLP), lambda b, t: (0, 0)),
                pl.BlockSpec((1, MLP), lambda b, t: (0, 0)),
                pl.BlockSpec((MLP, c_pad), lambda b, t: (0, 0)),
                pl.BlockSpec((1, c_pad), lambda b, t: (0, 0)),
            ],
            out_specs=pl.BlockSpec((B_TILE, c_pad), lambda b, t: (b, 0)),
            scratch_shapes=[pltpu.VMEM((B_TILE, HIDDEN), jnp.float32)],
        ),
        compiler_params=pltpu.CompilerParams(
            dimension_semantics=("parallel", "arbitrary"),
            vmem_limit_bytes=32 * 1024 * 1024,
        ),
        cost_estimate=cost,
    )(h, w1f, b1r, w2p, b2p)

    return out[:, :C]


def reference(hidden_states, w1, b1, w2, b2):
    feats = jnp.mean(hidden_states, axis=1)
    z = jnp.maximum(feats @ w1 + b1.reshape(1, -1), 0.0)
    return z @ w2 + b2.reshape(1, -1)


if __name__ == "__main__":
    key = jax.random.PRNGKey(0)
    k_h, k_w1, k_b1, k_w2, k_b2 = jax.random.split(key, 5)

    B, T = 2, 8  # small batch / short sequence of wav2vec2 frames
    hidden_states = jax.random.normal(k_h, (B, T, HIDDEN), dtype=jnp.float32)

    # Classifier parameters stored as (in_features, out_features).
    w1 = jax.random.normal(k_w1, (HIDDEN, MLP), dtype=jnp.float32) * 0.02
    b1 = jax.random.normal(k_b1, (1, MLP), dtype=jnp.float32) * 0.02
    w2 = jax.random.normal(k_w2, (MLP, NUM_CLASSES), dtype=jnp.float32) * 0.02
    b2 = jax.random.normal(k_b2, (1, NUM_CLASSES), dtype=jnp.float32) * 0.02

    # Single-time-tile path.
    out = jax.block_until_ready(emotion_classifier(hidden_states, w1, b1, w2, b2))
    assert out.shape == (B, NUM_CLASSES)
    ref = reference(hidden_states.astype(jnp.bfloat16).astype(jnp.float32),
                    w1, b1, w2, b2)
    assert jnp.allclose(out, ref, atol=1e-3, rtol=1e-3), "mismatch vs reference"

    # Tiled/pipelined time path with a partial final tile (80 = 2*32 + 16).
    T2 = 80
    hs2 = jax.random.normal(jax.random.PRNGKey(1), (B, T2, HIDDEN), dtype=jnp.float32)
    out2 = jax.block_until_ready(emotion_classifier(hs2, w1, b1, w2, b2, t_tile=32))
    ref2 = reference(hs2.astype(jnp.bfloat16).astype(jnp.float32), w1, b1, w2, b2)
    assert out2.shape == (B, NUM_CLASSES)
    assert jnp.allclose(out2, ref2, atol=1e-3, rtol=1e-3), "tiled mismatch vs reference"

    print("KERNEL_OK")
</pallas_src>

<mosaic_0001>
module attributes {stable_mosaic.version = 11 : i64} {
  func.func @emotion_classifier_kernel(%arg0: i32, %arg1: i32, %arg2: memref<2x8x768xbf16, #tpu.memory_space<vmem>>, %arg3: memref<768x256xf32, #tpu.memory_space<vmem>>, %arg4: memref<1x256xf32, #tpu.memory_space<vmem>>, %arg5: memref<256x128xf32, #tpu.memory_space<vmem>>, %arg6: memref<1x128xf32, #tpu.memory_space<vmem>>, %arg7: memref<2x128xf32, #tpu.memory_space<vmem>>, %arg8: memref<2x768xf32, #tpu.memory_space<vmem>>) attributes {dimension_semantics = [#tpu.dimension_semantics<parallel>, #tpu.dimension_semantics<arbitrary>], iteration_bounds = array<i64: 1, 1>, scalar_prefetch = 0 : i64, scratch_operands = 1 : i64, tpu.core_type = #tpu.core_type<tc>, window_params = [{transform_indices = @transform_0, window_bounds = array<i64: 2, 8, 768>}, {pipeline_mode = #tpu.pipeline_mode<synchronous>, transform_indices = @transform_1, window_bounds = array<i64: 768, 256>}, {pipeline_mode = #tpu.pipeline_mode<synchronous>, transform_indices = @transform_2, window_bounds = array<i64: 1, 256>}, {pipeline_mode = #tpu.pipeline_mode<synchronous>, transform_indices = @transform_3, window_bounds = array<i64: 256, 128>}, {pipeline_mode = #tpu.pipeline_mode<synchronous>, transform_indices = @transform_4, window_bounds = array<i64: 1, 128>}, {transform_indices = @transform_5, window_bounds = array<i64: 2, 128>}]} {
    %c0_i32 = arith.constant 0 : i32
    %0 = arith.cmpi eq, %arg1, %c0_i32 : i32
    %1 = arith.extui %0 : i1 to i32
    %c0_i32_0 = arith.constant 0 : i32
    %2 = arith.cmpi ne, %1, %c0_i32_0 : i32
    scf.if %2 {
      %cst_9 = arith.constant 0.000000e+00 : f32
      %12 = vector.broadcast %cst_9 : f32 to vector<2x768xf32>
      %c0_10 = arith.constant 0 : index
      %c0_11 = arith.constant 0 : index
      %13 = vector.load %arg8[%c0_10, %c0_11] : memref<2x768xf32, #tpu.memory_space<vmem>>, vector<2x768xf32>
      tpu.vector_store %arg8[%c0_10, %c0_11], %12 {strides = array<i32>} : memref<2x768xf32, #tpu.memory_space<vmem>>, vector<2x768xf32>,
    } else {
    }
    %c0 = arith.constant 0 : index
    %c0_1 = arith.constant 0 : index
    %c0_2 = arith.constant 0 : index
    %3 = vector.load %arg2[%c0, %c0_1, %c0_2] : memref<2x8x768xbf16, #tpu.memory_space<vmem>>, vector<2x8x768xbf16>
    %c0_3 = arith.constant 0 : index
    %c0_4 = arith.constant 0 : index
    %4 = vector.load %arg8[%c0_3, %c0_4] : memref<2x768xf32, #tpu.memory_space<vmem>>, vector<2x768xf32>
    %5 = arith.extf %3 : vector<2x8x768xbf16> to vector<2x8x768xf32>
    %cst = arith.constant dense<0.000000e+00> : vector<2x768xf32>
    %6 = vector.multi_reduction <add>, %5, %cst [1] : vector<2x8x768xf32> to vector<2x768xf32>
    %7 = arith.addf %4, %6 : vector<2x768xf32>
    %c0_5 = arith.constant 0 : index
    %c0_6 = arith.constant 0 : index
    %8 = vector.load %arg8[%c0_5, %c0_6] : memref<2x768xf32, #tpu.memory_space<vmem>>, vector<2x768xf32>
    tpu.vector_store %arg8[%c0_5, %c0_6], %7 {strides = array<i32>} : memref<2x768xf32, #tpu.memory_space<vmem>>, vector<2x768xf32>,
    %c0_i32_7 = arith.constant 0 : i32
    %9 = arith.cmpi eq, %arg1, %c0_i32_7 : i32
    %10 = arith.extui %9 : i1 to i32
    %c0_i32_8 = arith.constant 0 : i32
    %11 = arith.cmpi ne, %10, %c0_i32_8 : i32
    scf.if %11 {
      %c0_9 = arith.constant 0 : index
      %c0_10 = arith.constant 0 : index
      %12 = vector.load %arg8[%c0_9, %c0_10] : memref<2x768xf32, #tpu.memory_space<vmem>>, vector<2x768xf32>
      %cst_11 = arith.constant 1.250000e-01 : f32
      %13 = vector.broadcast %cst_11 : f32 to vector<2x768xf32>
      %14 = arith.mulf %12, %13 : vector<2x768xf32>
      %c0_12 = arith.constant 0 : index
      %c0_13 = arith.constant 0 : index
      %15 = vector.load %arg3[%c0_12, %c0_13] : memref<768x256xf32, #tpu.memory_space<vmem>>, vector<768x256xf32>
      %cst_14 = arith.constant dense<0.000000e+00> : vector<2x256xf32>
      %16 = tpu.matmul %14, %15, %cst_14 {dimension_numbers = #tpu.dot_dimension_numbers<[1], [0], [0], [1], [0, 0, 1, 1], [], []>} : vector<2x768xf32>, vector<768x256xf32>, vector<2x256xf32> -> vector<2x256xf32>
      %c0_15 = arith.constant 0 : index
      %c0_16 = arith.constant 0 : index
      %17 = vector.load %arg4[%c0_15, %c0_16] : memref<1x256xf32, #tpu.memory_space<vmem>>, vector<1x256xf32>
      %18 = vector.broadcast %17 : vector<1x256xf32> to vector<2x256xf32>
      %19 = arith.addf %16, %18 : vector<2x256xf32>
      %cst_17 = arith.constant 0.000000e+00 : f32
      %20 = vector.broadcast %cst_17 : f32 to vector<2x256xf32>
      %21 = arith.maximumf %19, %20 : vector<2x256xf32>
      %c0_18 = arith.constant 0 : index
      %c0_19 = arith.constant 0 : index
      %22 = vector.load %arg5[%c0_18, %c0_19] : memref<256x128xf32, #tpu.memory_space<vmem>>, vector<256x128xf32>
      %cst_20 = arith.constant dense<0.000000e+00> : vector<2x128xf32>
      %23 = tpu.matmul %21, %22, %cst_20 {dimension_numbers = #tpu.dot_dimension_numbers<[1], [0], [0], [1], [0, 0, 1, 1], [], []>} : vector<2x256xf32>, vector<256x128xf32>, vector<2x128xf32> -> vector<2x128xf32>
      %c0_21 = arith.constant 0 : index
      %c0_22 = arith.constant 0 : index
      %24 = vector.load %arg6[%c0_21, %c0_22] : memref<1x128xf32, #tpu.memory_space<vmem>>, vector<1x128xf32>
      %25 = vector.broadcast %24 : vector<1x128xf32> to vector<2x128xf32>
      %26 = arith.addf %23, %25 : vector<2x128xf32>
      %c0_23 = arith.constant 0 : index
      %c0_24 = arith.constant 0 : index
      %27 = vector.load %arg7[%c0_23, %c0_24] : memref<2x128xf32, #tpu.memory_space<vmem>>, vector<2x128xf32>
      tpu.vector_store %arg7[%c0_23, %c0_24], %26 {strides = array<i32>} : memref<2x128xf32, #tpu.memory_space<vmem>>, vector<2x128xf32>,
    } else {
    }
    return
  }
  func.func @transform_0(%arg0: i32, %arg1: i32) -> (i32, i32, i32) {
    %c0_i32 = arith.constant 0 : i32
    %c0_i32_0 = arith.constant 0 : i32
    return %arg0, %arg1, %c0_i32 : i32, i32, i32
  }
  func.func @transform_1(%arg0: i32, %arg1: i32) -> (i32, i32) {
    %c0_i32 = arith.constant 0 : i32
    %c0_i32_0 = arith.constant 0 : i32
    %c0_i32_1 = arith.constant 0 : i32
    return %c0_i32, %c0_i32_0 : i32, i32
  }
  func.func @transform_2(%arg0: i32, %arg1: i32) -> (i32, i32) {
    %c0_i32 = arith.constant 0 : i32
    %c0_i32_0 = arith.constant 0 : i32
    %c0_i32_1 = arith.constant 0 : i32
    return %c0_i32, %c0_i32_0 : i32, i32
  }
  func.func @transform_3(%arg0: i32, %arg1: i32) -> (i32, i32) {
    %c0_i32 = arith.constant 0 : i32
    %c0_i32_0 = arith.constant 0 : i32
    %c0_i32_1 = arith.constant 0 : i32
    return %c0_i32, %c0_i32_0 : i32, i32
  }
  func.func @transform_4(%arg0: i32, %arg1: i32) -> (i32, i32) {
    %c0_i32 = arith.constant 0 : i32
    %c0_i32_0 = arith.constant 0 : i32
    %c0_i32_1 = arith.constant 0 : i32
    return %c0_i32, %c0_i32_0 : i32, i32
  }
  func.func @transform_5(%arg0: i32, %arg1: i32) -> (i32, i32) {
    %c0_i32 = arith.constant 0 : i32
    %c0_i32_0 = arith.constant 0 : i32
    return %arg0, %c0_i32 : i32, i32
  }
}

</mosaic_0001>

<llo_original>
// kernel: tpu_custom_call.1
$region0: #{tpu_custom_call.1}
  #allocation0 [shape = 'u32[]', space=smem, size = 0x4, offset = 0x4, fixed_abs, tag = 'smem constant byte address 0x4 - core index']
  #allocation1 [shape = 'u32[144,128]{1,0:T(1,128)}', space=vmem, size = 0x12000, scoped, tag = 'internal scratch']
  #allocation2 [shape = 'f32[2,768]{1,0:T(2,128)}', space=vmem, size = 0x1800, scoped, tag = 'scratch operand']
  %s0 = inlined_call_operand.hbm [shape: bf16[2,8,768], index: 0, kind: input, shape index: {}]
  %s1 = inlined_call_operand.hbm [shape: f32[768,256], index: 1, kind: input, shape index: {}]
  %s2 = inlined_call_operand.vmem [shape: f32[1,256], index: 2, kind: input, shape index: {}]
  %s3 = inlined_call_operand.hbm [shape: f32[256,128], index: 3, kind: input, shape index: {}]
  %s4 = inlined_call_operand.vmem [shape: f32[1,128], index: 4, kind: input, shape index: {}]
  %s5 = inlined_call_operand.hbm [shape: f32[2,128], index: 5, kind: output, shape index: {}]
  %s6 = sld [smem:[#allocation0]]
  $region50: #{tpu_custom_call.1} parent=0
    _
  %s8 = ssub.s32 1, %s6
  %s9 = scalar_select 0, %s8, %s6
  $region1: #{tpu_custom_call.1} parent=0
    #allocation3 [shape = 'u8[24576]{0}', space=vmem, size = 0x6000, scoped, tag = 'input window, operand 0, single buffered']
    #allocation4 [shape = 's32[1]{0}', space=sflag, size = 0x4, scoped, tag = 'scoped memory for tpu_custom_call.1']
    #allocation5 [shape = 's32[1]{0}', space=sflag, size = 0x4, scoped, tag = 'scoped memory for tpu_custom_call.1']
    #allocation6 [shape = 'u8[786432]{0}', space=vmem, size = 0xc0000, scoped, tag = 'input window, operand 1, single buffered']
    #allocation7 [shape = 's32[1]{0}', space=sflag, size = 0x4, scoped, tag = 'scoped memory for tpu_custom_call.1']
    #allocation8 [shape = 'u8[131072]{0}', space=vmem, size = 0x20000, scoped, tag = 'input window, operand 3, single buffered']
    #allocation9 [shape = 'u8[1024]{0}', space=vmem, size = 0x400, scoped, tag = 'output window, operand 0, single buffered']
    %10 = vsyncpa [#allocation4], 0
    %11 = vsyncpa [#allocation7], 0
    %12 = vsyncpa [#allocation5], 0
    // Predicated region
    $region2: #{tpu_custom_call.1} parent=1 // pred_check
      _
    $region3: #{tpu_custom_call.1} parent=1 // pred_check_branch
      %14 = sbr.rel (0) target = $region5
    $region4: #{tpu_custom_call.1} parent=1 // pred_region
      %s16 = ssub.s32 768, 768
      %17 = vsyncadd [#allocation4], %s16
      %s18 = sshll.u32 [#allocation3], 4
      %s19 = int_to_ptr.vmem [resolvable:$true] %s18
      %24 = dma.hbm_to_vmem [thread:$0]  %s0, 768, %s19, [#allocation4], 384, 384, 24
    $region5: #{tpu_custom_call.1} parent=1 // pred_fallthru
      _
    // Predicated region
    $region6: #{tpu_custom_call.1} parent=1 // pred_check
      _
    $region7: #{tpu_custom_call.1} parent=1 // pred_check_branch
      %26 = sbr.rel (0) target = $region9
    $region8: #{tpu_custom_call.1} parent=1 // pred_region
      %s28 = ssub.s32 24576, 24576
      %29 = vsyncadd [#allocation7], %s28
      %s30 = sshll.u32 [#allocation6], 4
      %s31 = int_to_ptr.vmem [resolvable:$true] %s30
      %36 = dma.hbm_to_vmem [thread:$0]  %s1, 24576, %s31, [#allocation7], 256, 256, 16
    $region9: #{tpu_custom_call.1} parent=1 // pred_fallthru
      _
    // Predicated region
    $region10: #{tpu_custom_call.1} parent=1 // pred_check
      _
    $region11: #{tpu_custom_call.1} parent=1 // pred_check_branch
      %38 = sbr.rel (0) target = $region13
    $region12: #{tpu_custom_call.1} parent=1 // pred_region
      _
    $region13: #{tpu_custom_call.1} parent=1 // pred_fallthru
      _
    // Predicated region
    $region14: #{tpu_custom_call.1} parent=1 // pred_check
      _
    $region15: #{tpu_custom_call.1} parent=1 // pred_check_branch
      %40 = sbr.rel (0) target = $region17
    $region16: #{tpu_custom_call.1} parent=1 // pred_region
      %s42 = ssub.s32 4096, 4096
      %43 = vsyncadd [#allocation7], %s42
      %s44 = sshll.u32 [#allocation8], 4
      %s45 = int_to_ptr.vmem [resolvable:$true] %s44
      %50 = dma.hbm_to_vmem [thread:$0]  %s3, 4096, %s45, [#allocation7], 128, 128, 8
    $region17: #{tpu_custom_call.1} parent=1 // pred_fallthru
      _
    // Predicated region
    $region18: #{tpu_custom_call.1} parent=1 // pred_check
      _
    $region19: #{tpu_custom_call.1} parent=1 // pred_check_branch
      %52 = sbr.rel (0) target = $region21
    $region20: #{tpu_custom_call.1} parent=1 // pred_region
      _
    $region21: #{tpu_custom_call.1} parent=1 // pred_fallthru
      _
    // Predicated region
    $region22: #{tpu_custom_call.1} parent=1 // pred_check
      _
    $region23: #{tpu_custom_call.1} parent=1 // pred_check_branch
      %54 = sbr.rel (0) target = $region25
    $region24: #{tpu_custom_call.1} parent=1 // pred_region
      %55 = dma.done [#allocation4], 768
    $region25: #{tpu_custom_call.1} parent=1 // pred_fallthru
      _
    // Predicated region
    $region26: #{tpu_custom_call.1} parent=1 // pred_check
      _
    $region27: #{tpu_custom_call.1} parent=1 // pred_check_branch
      %57 = sbr.rel (0) target = $region29
    $region28: #{tpu_custom_call.1} parent=1 // pred_region
      %58 = dma.done [#allocation7], 24576
    $region29: #{tpu_custom_call.1} parent=1 // pred_fallthru
      _
    // Predicated region
    $region30: #{tpu_custom_call.1} parent=1 // pred_check
      _
    $region31: #{tpu_custom_call.1} parent=1 // pred_check_branch
      %60 = sbr.rel (0) target = $region33
    $region32: #{tpu_custom_call.1} parent=1 // pred_region
      %61 = dma.done [#allocation7], 4096
    $region33: #{tpu_custom_call.1} parent=1 // pred_fallthru
      _
    %p62 = scmp.eq.s32.totalorder 0, 0
    // Predicated region
    $region34: #{tpu_custom_call.1} parent=1 // pred_check
      %p63 = pneg %p62
    $region35: #{tpu_custom_call.1} parent=1 // pred_check_branch
      %65 = sbr.rel (%p63) target = $region37
    $region36: #{tpu_custom_call.1} parent=1 // pred_region
      %66 = vst [vmem:[#allocation2] sm:$0xff] 0.0
      %67 = vst [vmem:[#allocation2 + $0x8] sm:$0xf] 0.0
    $region37: #{tpu_custom_call.1} parent=1 // pred_fallthru
      _
    %v68 = vld [vmem:[#allocation3] sm:$0xff]
    %v69 = vld [vmem:[#allocation3 + $0x8] sm:$0xff]
    %v70 = vld [vmem:[#allocation3 + $0x10] sm:$0xff]
    %v71 = vld [vmem:[#allocation3 + $0x18] sm:$0xff]
    %v72 = vld [vmem:[#allocation3 + $0x20] sm:$0xff]
    %v73 = vld [vmem:[#allocation3 + $0x28] sm:$0xff]
    %v74 = vld [vmem:[#allocation2] sm:$0xff]
    %v75 = vld [vmem:[#allocation2 + $0x8] sm:$0xf]
    %v76 = vunpack.c.l.bf16 %v68
    %v77 = vunpack.c.h.bf16 %v68
    %v78 = vunpack.c.l.bf16 %v69
    %v79 = vunpack.c.h.bf16 %v69
    %v80 = vunpack.c.l.bf16 %v70
    %v81 = vunpack.c.h.bf16 %v70
    %v82 = vunpack.c.l.bf16 %v71
    %v83 = vunpack.c.h.bf16 %v71
    %v84 = vunpack.c.l.bf16 %v72
    %v85 = vunpack.c.h.bf16 %v72
    %v86 = vunpack.c.l.bf16 %v73
    %v87 = vunpack.c.h.bf16 %v73
    %v88 = vrot.slane %v76, 4
    %v89 = vadd.f32 %v76, %v88
    %v90 = vrot.slane %v89, 2
    %v91 = vadd.f32 %v89, %v90
    %v92 = vrot.slane %v91, 1
    %v93 = vadd.f32 %v91, %v92
    %v94 = vrot.slane %v77, 4
    %v95 = vadd.f32 %v77, %v94
    %v96 = vrot.slane %v95, 2
    %v97 = vadd.f32 %v95, %v96
    %v98 = vrot.slane %v97, 1
    %v99 = vadd.f32 %v97, %v98
    %v100 = vrot.slane %v78, 4
    %v101 = vadd.f32 %v78, %v100
    %v102 = vrot.slane %v101, 2
    %v103 = vadd.f32 %v101, %v102
    %v104 = vrot.slane %v103, 1
    %v105 = vadd.f32 %v103, %v104
    %v106 = vrot.slane %v79, 4
    %v107 = vadd.f32 %v79, %v106
    %v108 = vrot.slane %v107, 2
    %v109 = vadd.f32 %v107, %v108
    %v110 = vrot.slane %v109, 1
    %v111 = vadd.f32 %v109, %v110
    %v112 = vrot.slane %v80, 4
    %v113 = vadd.f32 %v80, %v112
    %v114 = vrot.slane %v113, 2
    %v115 = vadd.f32 %v113, %v114
    %v116 = vrot.slane %v115, 1
    %v117 = vadd.f32 %v115, %v116
    %v118 = vrot.slane %v81, 4
    %v119 = vadd.f32 %v81, %v118
    %v120 = vrot.slane %v119, 2
    %v121 = vadd.f32 %v119, %v120
    %v122 = vrot.slane %v121, 1
    %v123 = vadd.f32 %v121, %v122
    %v124 = vrot.slane %v82, 4
    %v125 = vadd.f32 %v82, %v124
    %v126 = vrot.slane %v125, 2
    %v127 = vadd.f32 %v125, %v126
    %v128 = vrot.slane %v127, 1
    %v129 = vadd.f32 %v127, %v128
    %v130 = vrot.slane %v83, 4
    %v131 = vadd.f32 %v83, %v130
    %v132 = vrot.slane %v131, 2
    %v133 = vadd.f32 %v131, %v132
    %v134 = vrot.slane %v133, 1
    %v135 = vadd.f32 %v133, %v134
    %v136 = vrot.slane %v84, 4
    %v137 = vadd.f32 %v84, %v136
    %v138 = vrot.slane %v137, 2
    %v139 = vadd.f32 %v137, %v138
    %v140 = vrot.slane %v139, 1
    %v141 = vadd.f32 %v139, %v140
    %v142 = vrot.slane %v85, 4
    %v143 = vadd.f32 %v85, %v142
    %v144 = vrot.slane %v143, 2
    %v145 = vadd.f32 %v143, %v144
    %v146 = vrot.slane %v145, 1
    %v147 = vadd.f32 %v145, %v146
    %v148 = vrot.slane %v86, 4
    %v149 = vadd.f32 %v86, %v148
    %v150 = vrot.slane %v149, 2
    %v151 = vadd.f32 %v149, %v150
    %v152 = vrot.slane %v151, 1
    %v153 = vadd.f32 %v151, %v152
    %v154 = vrot.slane %v87, 4
    %v155 = vadd.f32 %v87, %v154
    %v156 = vrot.slane %v155, 2
    %v157 = vadd.f32 %v155, %v156
    %v158 = vrot.slane %v157, 1
    %v159 = vadd.f32 %v157, %v158
    %v172 = vcombine.low %v93, %v99
    %v173 = vcombine.low %v105, %v111
    %v175 = vunpack.c.l.s4 1983009808
    %v176 = vunpack.c.0.s8 %v175
    %v177 = vlaneseq
    %v178 = vshrl.u32 %v177, 7
    %v179 = vsub.s32 %v176, %v178
    %v180 = vrot.slane %v172, %v179
    %v182 = vunpack.c.l.s4 1983009808
    %v183 = vunpack.c.0.s8 %v182
    %v184 = vlaneseq
    %v185 = vshrl.u32 %v184, 7
    %v186 = vsub.s32 %v183, %v185
    %v187 = vrot.slane %v173, %v186
    %v188 = vcombine.low %v180, %v187
    %v189 = vcombine.low %v117, %v123
    %v191 = vunpack.c.l.s4 1983009808
    %v192 = vunpack.c.0.s8 %v191
    %v193 = vlaneseq
    %v194 = vshrl.u32 %v193, 7
    %v195 = vsub.s32 %v192, %v194
    %v196 = vrot.slane %v189, %v195
    %v197 = vcombine.low %v129, %v135
    %v198 = vcombine.low %v141, %v147
    %v200 = vunpack.c.l.s4 1983009808
    %v201 = vunpack.c.0.s8 %v200
    %v202 = vlaneseq
    %v203 = vshrl.u32 %v202, 7
    %v204 = vsub.s32 %v201, %v203
    %v205 = vrot.slane %v197, %v204
    %v207 = vunpack.c.l.s4 1983009808
    %v208 = vunpack.c.0.s8 %v207
    %v209 = vlaneseq
    %v210 = vshrl.u32 %v209, 7
    %v211 = vsub.s32 %v208, %v210
    %v212 = vrot.slane %v198, %v211
    %v213 = vcombine.low %v205, %v212
    %v214 = vcombine.low %v153, %v159
    %v216 = vunpack.c.l.s4 1983009808
    %v217 = vunpack.c.0.s8 %v216
    %v218 = vlaneseq
    %v219 = vshrl.u32 %v218, 7
    %v220 = vsub.s32 %v217, %v219
    %v221 = vrot.slane %v214, %v220
    %vm222 = vcmask 1044484
    %v223 = vsel %vm222, %v188, %v188
    %vm224 = vcmask 1046534
    %v225 = vsel %vm224, %v188, %v223
    %v226 = vrot.slane %v213, 7
    %vm227 = vcmask 1041409
    %v228 = vsel %vm227, %v226, %v225
    %vm229 = vcmask 1043459
    %v230 = vsel %vm229, %v226, %v228
    %vm231 = vcmask 1045509
    %v232 = vsel %vm231, %v226, %v230
    %vm233 = vcmask 1047559
    %v234 = vsel %vm233, %v226, %v232
    %v235 = vsel %vm222, %v196, %v196
    %v236 = vsel %vm224, %v196, %v235
    %v237 = vrot.slane %v221, 7
    %v238 = vsel %vm227, %v237, %v236
    %v239 = vsel %vm229, %v237, %v238
    %v240 = vsel %vm231, %v237, %v239
    %v241 = vsel %vm233, %v237, %v240
    %v244 = vadd.f32 %v74, %v234
    %v245 = vadd.f32 %v75, %v241
    %246 = vst [vmem:[#allocation2] sm:$0xff] %v244
    %247 = vst [vmem:[#allocation2 + $0x8] sm:$0xf] %v245
    // Predicated region
    $region38: #{tpu_custom_call.1} parent=1 // pred_check
      %p248 = pneg %p62
    $region39: #{tpu_custom_call.1} parent=1 // pred_check_branch
      %250 = sbr.rel (%p248) target = $region41
    $region40: #{tpu_custom_call.1} parent=1 // pred_region
      %v251 = vld [vmem:[#allocation2] sm:$0xff]
      %v252 = vld [vmem:[#allocation2 + $0x8] sm:$0xf]
      %v253 = vmul.f32 %v251, 0.125
      %v254 = vmul.f32 %v252, 0.125
      %v255 = vld [vmem:[#allocation6] sm:$0xff]
      %v256 = vld [vmem:[#allocation6 + $0x8] sm:$0xff]
      %v257 = vld [vmem:[#allocation6 + $0x10] sm:$0xff]
      %v258 = vld [vmem:[#allocation6 + $0x18] sm:$0xff]
      %v259 = vld [vmem:[#allocation6 + $0x20] sm:$0xff]
      %v260 = vld [vmem:[#allocation6 + $0x28] sm:$0xff]
      %v261 = vld [vmem:[#allocation6 + $0x30] sm:$0xff]
      %v262 = vld [vmem:[#allocation6 + $0x38] sm:$0xff]
      %v263 = vld [vmem:[#allocation6 + $0x40] sm:$0xff]
      %v264 = vld [vmem:[#allocation6 + $0x48] sm:$0xff]
      %v265 = vld [vmem:[#allocation6 + $0x50] sm:$0xff]
      %v266 = vld [vmem:[#allocation6 + $0x58] sm:$0xff]
      %v267 = vld [vmem:[#allocation6 + $0x60] sm:$0xff]
      %v268 = vld [vmem:[#allocation6 + $0x68] sm:$0xff]
      %v269 = vld [vmem:[#allocation6 + $0x70] sm:$0xff]
      %v270 = vld [vmem:[#allocation6 + $0x78] sm:$0xff]
      %v271 = vld [vmem:[#allocation6 + $0x80] sm:$0xff]
      %v272 = vld [vmem:[#allocation6 + $0x88] sm:$0xff]
      %v273 = vld [vmem:[#allocation6 + $0x90] sm:$0xff]
      %v274 = vld [vmem:[#allocation6 + $0x98] sm:$0xff]
      %v275 = vld [vmem:[#allocation6 + $0xa0] sm:$0xff]
      %v276 = vld [vmem:[#allocation6 + $0xa8] sm:$0xff]
      %v277 = vld [vmem:[#allocation6 + $0xb0] sm:$0xff]
      %v278 = vld [vmem:[#allocation6 + $0xb8] sm:$0xff]
      %v279 = vld [vmem:[#allocation6 + $0xc0] sm:$0xff]
      %v280 = vld [vmem:[#allocation6 + $0xc8] sm:$0xff]
      %v281 = vld [vmem:[#allocation6 + $0xd0] sm:$0xff]
      %v282 = vld [vmem:[#allocation6 + $0xd8] sm:$0xff]
      %v283 = vld [vmem:[#allocation6 + $0xe0] sm:$0xff]
      %v284 = vld [vmem:[#allocation6 + $0xe8] sm:$0xff]
      %v285 = vld [vmem:[#allocation6 + $0xf0] sm:$0xff]
      %v286 = vld [vmem:[#allocation6 + $0xf8] sm:$0xff]
      %v287 = vld [vmem:[#allocation6 + $0x100] sm:$0xff]
      %v288 = vld [vmem:[#allocation6 + $0x108] sm:$0xff]
      %v289 = vld [vmem:[#allocation6 + $0x110] sm:$0xff]
      %v290 = vld [vmem:[#allocation6 + $0x118] sm:$0xff]
      %v291 = vld [vmem:[#allocation6 + $0x120] sm:$0xff]
      %v292 = vld [vmem:[#allocation6 + $0x128] sm:$0xff]
      %v293 = vld [vmem:[#allocation6 + $0x130] sm:$0xff]
      %v294 = vld [vmem:[#allocation6 + $0x138] sm:$0xff]
      %v295 = vld [vmem:[#allocation6 + $0x140] sm:$0xff]
      %v296 = vld [vmem:[#allocation6 + $0x148] sm:$0xff]
      %v297 = vld [vmem:[#allocation6 + $0x150] sm:$0xff]
      %v298 = vld [vmem:[#allocation6 + $0x158] sm:$0xff]
      %v299 = vld [vmem:[#allocation6 + $0x160] sm:$0xff]
      %v300 = vld [vmem:[#allocation6 + $0x168] sm:$0xff]
      %v301 = vld [vmem:[#allocation6 + $0x170] sm:$0xff]
      %v302 = vld [vmem:[#allocation6 + $0x178] sm:$0xff]
      %v303 = vld [vmem:[#allocation6 + $0x180] sm:$0xff]
      %v304 = vld [vmem:[#allocation6 + $0x188] sm:$0xff]
      %v305 = vld [vmem:[#allocation6 + $0x190] sm:$0xff]
      %v306 = vld [vmem:[#allocation6 + $0x198] sm:$0xff]
      %v307 = vld [vmem:[#allocation6 + $0x1a0] sm:$0xff]
      %v308 = vld [vmem:[#allocation6 + $0x1a8] sm:$0xff]
      %v309 = vld [vmem:[#allocation6 + $0x1b0] sm:$0xff]
      %v310 = vld [vmem:[#allocation6 + $0x1b8] sm:$0xff]
      %v311 = vld [vmem:[#allocation6 + $0x1c0] sm:$0xff]
      %v312 = vld [vmem:[#allocation6 + $0x1c8] sm:$0xff]
      %v313 = vld [vmem:[#allocation6 + $0x1d0] sm:$0xff]
      %v314 = vld [vmem:[#allocation6 + $0x1d8] sm:$0xff]
      %v315 = vld [vmem:[#allocation6 + $0x1e0] sm:$0xff]
      %v316 = vld [vmem:[#allocation6 + $0x1e8] sm:$0xff]
      %v317 = vld [vmem:[#allocation6 + $0x1f0] sm:$0xff]
      %v318 = vld [vmem:[#allocation6 + $0x1f8] sm:$0xff]
      %v319 = vld [vmem:[#allocation6 + $0x200] sm:$0xff]
      %v320 = vld [vmem:[#allocation6 + $0x208] sm:$0xff]
      %v321 = vld [vmem:[#allocation6 + $0x210] sm:$0xff]
      %v322 = vld [vmem:[#allocation6 + $0x218] sm:$0xff]
      %v323 = vld [vmem:[#allocation6 + $0x220] sm:$0xff]
      %v324 = vld [vmem:[#allocation6 + $0x228] sm:$0xff]
      %v325 = vld [vmem:[#allocation6 + $0x230] sm:$0xff]
      %v326 = vld [vmem:[#allocation6 + $0x238] sm:$0xff]
      %v327 = vld [vmem:[#allocation6 + $0x240] sm:$0xff]
      %v328 = vld [vmem:[#allocation6 + $0x248] sm:$0xff]
      %v329 = vld [vmem:[#allocation6 + $0x250] sm:$0xff]
      %v330 = vld [vmem:[#allocation6 + $0x258] sm:$0xff]
      %v331 = vld [vmem:[#allocation6 + $0x260] sm:$0xff]
      %v332 = vld [vmem:[#allocation6 + $0x268] sm:$0xff]
      %v333 = vld [vmem:[#allocation6 + $0x270] sm:$0xff]
      %v334 = vld [vmem:[#allocation6 + $0x278] sm:$0xff]
      %v335 = vld [vmem:[#allocation6 + $0x280] sm:$0xff]
      %v336 = vld [vmem:[#allocation6 + $0x288] sm:$0xff]
      %v337 = vld [vmem:[#allocation6 + $0x290] sm:$0xff]
      %v338 = vld [vmem:[#allocation6 + $0x298] sm:$0xff]
      %v339 = vld [vmem:[#allocation6 + $0x2a0] sm:$0xff]
      %v340 = vld [vmem:[#allocation6 + $0x2a8] sm:$0xff]
      %v341 = vld [vmem:[#allocation6 + $0x2b0] sm:$0xff]
      %v342 = vld [vmem:[#allocation6 + $0x2b8] sm:$0xff]
      %v343 = vld [vmem:[#allocation6 + $0x2c0] sm:$0xff]
      %v344 = vld [vmem:[#allocation6 + $0x2c8] sm:$0xff]
      %v345 = vld [vmem:[#allocation6 + $0x2d0] sm:$0xff]
      %v346 = vld [vmem:[#allocation6 + $0x2d8] sm:$0xff]
      %v347 = vld [vmem:[#allocation6 + $0x2e0] sm:$0xff]
      %v348 = vld [vmem:[#allocation6 + $0x2e8] sm:$0xff]
      %v349 = vld [vmem:[#allocation6 + $0x2f0] sm:$0xff]
      %v350 = vld [vmem:[#allocation6 + $0x2f8] sm:$0xff]
      %v351 = vld [vmem:[#allocation6 + $0x300] sm:$0xff]
      %v352 = vld [vmem:[#allocation6 + $0x308] sm:$0xff]
      %v353 = vld [vmem:[#allocation6 + $0x310] sm:$0xff]
      %v354 = vld [vmem:[#allocation6 + $0x318] sm:$0xff]
      %v355 = vld [vmem:[#allocation6 + $0x320] sm:$0xff]
      %v356 = vld [vmem:[#allocation6 + $0x328] sm:$0xff]
      %v357 = vld [vmem:[#allocation6 + $0x330] sm:$0xff]
      %v358 = vld [vmem:[#allocation6 + $0x338] sm:$0xff]
      %v359 = vld [vmem:[#allocation6 + $0x340] sm:$0xff]
      %v360 = vld [vmem:[#allocation6 + $0x348] sm:$0xff]
      %v361 = vld [vmem:[#allocation6 + $0x350] sm:$0xff]
      %v362 = vld [vmem:[#allocation6 + $0x358] sm:$0xff]
      %v363 = vld [vmem:[#allocation6 + $0x360] sm:$0xff]
      %v364 = vld [vmem:[#allocation6 + $0x368] sm:$0xff]
      %v365 = vld [vmem:[#allocation6 + $0x370] sm:$0xff]
      %v366 = vld [vmem:[#allocation6 + $0x378] sm:$0xff]
      %v367 = vld [vmem:[#allocation6 + $0x380] sm:$0xff]
      %v368 = vld [vmem:[#allocation6 + $0x388] sm:$0xff]
      %v369 = vld [vmem:[#allocation6 + $0x390] sm:$0xff]
      %v370 = vld [vmem:[#allocation6 + $0x398] sm:$0xff]
      %v371 = vld [vmem:[#allocation6 + $0x3a0] sm:$0xff]
      %v372 = vld [vmem:[#allocation6 + $0x3a8] sm:$0xff]
      %v373 = vld [vmem:[#allocation6 + $0x3b0] sm:$0xff]
      %v374 = vld [vmem:[#allocation6 + $0x3b8] sm:$0xff]
      %v375 = vld [vmem:[#allocation6 + $0x3c0] sm:$0xff]
      %v376 = vld [vmem:[#allocation6 + $0x3c8] sm:$0xff]
      %v377 = vld [vmem:[#allocation6 + $0x3d0] sm:$0xff]
      %v378 = vld [vmem:[#allocation6 + $0x3d8] sm:$0xff]
      %v379 = vld [vmem:[#allocation6 + $0x3e0] sm:$0xff]
      %v380 = vld [vmem:[#allocation6 + $0x3e8] sm:$0xff]
      %v381 = vld [vmem:[#allocation6 + $0x3f0] sm:$0xff]
      %v382 = vld [vmem:[#allocation6 + $0x3f8] sm:$0xff]
      %v383 = vld [vmem:[#allocation6 + $0x400] sm:$0xff]
      %v384 = vld [vmem:[#allocation6 + $0x408] sm:$0xff]
      %v385 = vld [vmem:[#allocation6 + $0x410] sm:$0xff]
      %v386 = vld [vmem:[#allocation6 + $0x418] sm:$0xff]
      %v387 = vld [vmem:[#allocation6 + $0x420] sm:$0xff]
      %v388 = vld [vmem:[#allocation6 + $0x428] sm:$0xff]
      %v389 = vld [vmem:[#allocation6 + $0x430] sm:$0xff]
      %v390 = vld [vmem:[#allocation6 + $0x438] sm:$0xff]
      %v391 = vld [vmem:[#allocation6 + $0x440] sm:$0xff]
      %v392 = vld [vmem:[#allocation6 + $0x448] sm:$0xff]
      %v393 = vld [vmem:[#allocation6 + $0x450] sm:$0xff]
      %v394 = vld [vmem:[#allocation6 + $0x458] sm:$0xff]
      %v395 = vld [vmem:[#allocation6 + $0x460] sm:$0xff]
      %v396 = vld [vmem:[#allocation6 + $0x468] sm:$0xff]
      %v397 = vld [vmem:[#allocation6 + $0x470] sm:$0xff]
      %v398 = vld [vmem:[#allocation6 + $0x478] sm:$0xff]
      %v399 = vld [vmem:[#allocation6 + $0x480] sm:$0xff]
      %v400 = vld [vmem:[#allocation6 + $0x488] sm:$0xff]
      %v401 = vld [vmem:[#allocation6 + $0x490] sm:$0xff]
      %v402 = vld [vmem:[#allocation6 + $0x498] sm:$0xff]
      %v403 = vld [vmem:[#allocation6 + $0x4a0] sm:$0xff]
      %v404 = vld [vmem:[#allocation6 + $0x4a8] sm:$0xff]
      %v405 = vld [vmem:[#allocation6 + $0x4b0] sm:$0xff]
      %v406 = vld [vmem:[#allocation6 + $0x4b8] sm:$0xff]
      %v407 = vld [vmem:[#allocation6 + $0x4c0] sm:$0xff]
      %v408 = vld [vmem:[#allocation6 + $0x4c8] sm:$0xff]
      %v409 = vld [vmem:[#allocation6 + $0x4d0] sm:$0xff]
      %v410 = vld [vmem:[#allocation6 + $0x4d8] sm:$0xff]
      %v411 = vld [vmem:[#allocation6 + $0x4e0] sm:$0xff]
      %v412 = vld [vmem:[#allocation6 + $0x4e8] sm:$0xff]
      %v413 = vld [vmem:[#allocation6 + $0x4f0] sm:$0xff]
      %v414 = vld [vmem:[#allocation6 + $0x4f8] sm:$0xff]
      %v415 = vld [vmem:[#allocation6 + $0x500] sm:$0xff]
      %v416 = vld [vmem:[#allocation6 + $0x508] sm:$0xff]
      %v417 = vld [vmem:[#allocation6 + $0x510] sm:$0xff]
      %v418 = vld [vmem:[#allocation6 + $0x518] sm:$0xff]
      %v419 = vld [vmem:[#allocation6 + $0x520] sm:$0xff]
      %v420 = vld [vmem:[#allocation6 + $0x528] sm:$0xff]
      %v421 = vld [vmem:[#allocation6 + $0x530] sm:$0xff]
      %v422 = vld [vmem:[#allocation6 + $0x538] sm:$0xff]
      %v423 = vld [vmem:[#allocation6 + $0x540] sm:$0xff]
      %v424 = vld [vmem:[#allocation6 + $0x548] sm:$0xff]
      %v425 = vld [vmem:[#allocation6 + $0x550] sm:$0xff]
      %v426 = vld [vmem:[#allocation6 + $0x558] sm:$0xff]
      %v427 = vld [vmem:[#allocation6 + $0x560] sm:$0xff]
      %v428 = vld [vmem:[#allocation6 + $0x568] sm:$0xff]
      %v429 = vld [vmem:[#allocation6 + $0x570] sm:$0xff]
      %v430 = vld [vmem:[#allocation6 + $0x578] sm:$0xff]
      %v431 = vld [vmem:[#allocation6 + $0x580] sm:$0xff]
      %v432 = vld [vmem:[#allocation6 + $0x588] sm:$0xff]
      %v433 = vld [vmem:[#allocation6 + $0x590] sm:$0xff]
      %v434 = vld [vmem:[#allocation6 + $0x598] sm:$0xff]
      %v435 = vld [vmem:[#allocation6 + $0x5a0] sm:$0xff]
      %v436 = vld [vmem:[#allocation6 + $0x5a8] sm:$0xff]
      %v437 = vld [vmem:[#allocation6 + $0x5b0] sm:$0xff]
      %v438 = vld [vmem:[#allocation6 + $0x5b8] sm:$0xff]
      %v439 = vld [vmem:[#allocation6 + $0x5c0] sm:$0xff]
      %v440 = vld [vmem:[#allocation6 + $0x5c8] sm:$0xff]
      %v441 = vld [vmem:[#allocation6 + $0x5d0] sm:$0xff]
      %v442 = vld [vmem:[#allocation6 + $0x5d8] sm:$0xff]
      %v443 = vld [vmem:[#allocation6 + $0x5e0] sm:$0xff]
      %v444 = vld [vmem:[#allocation6 + $0x5e8] sm:$0xff]
      %v445 = vld [vmem:[#allocation6 + $0x5f0] sm:$0xff]
      %v446 = vld [vmem:[#allocation6 + $0x5f8] sm:$0xff]
      %v447 = vld [vmem:[%s2] sm:$0x3]
      %v449 = vlaneseq
      %v450 = vshrl.u32 %v449, 7
      %v451 = vsub.s32 0, %v450
      %v452 = vrot.slane %v447, %v451
      %v453 = vlaneseq
      %v454 = vshrl.u32 %v453, 7
      %v455 = vsub.s32 1, %v454
      %v456 = vrot.slane %v447, %v455
      %v461 = vcombine.high %v253, %v253
      %v463 = vunpack.c.l.s4 1983009808
      %v464 = vunpack.c.0.s8 %v463
      %v465 = vlaneseq
      %v466 = vshrl.u32 %v465, 7
      %v467 = vsub.s32 %v464, %v466
      %v468 = vrot.slane %v253, %v467
      %v470 = vunpack.c.l.s4 1983009808
      %v471 = vunpack.c.0.s8 %v470
      %v472 = vlaneseq
      %v473 = vshrl.u32 %v472, 7
      %v474 = vsub.s32 %v471, %v473
      %v475 = vrot.slane %v461, %v474
      %v476 = vcombine.high %v468, %v468
      %v477 = vcombine.high %v475, %v475
      %v479 = vunpack.c.l.s4 1983009808
      %v480 = vunpack.c.0.s8 %v479
      %v481 = vlaneseq
      %v482 = vshrl.u32 %v481, 7
      %v483 = vsub.s32 %v480, %v482
      %v484 = vrot.slane %v254, %v483
      %v485 = vcombine.high %v484, %v484
      %492 = vmatprep.subr.mxu0 %v256
      %493 = vmatpush1.msra.mxu0 %v255
      %494 = vmatprep.subr.mxu0 %v258
      %495 = vmatpush1.msra.mxu0 %v257
      %496 = vmatprep.subr.mxu0 %v260
      %497 = vmatpush1.msra.mxu0 %v259
      %498 = vmatprep.subr.mxu0 %v262
      %499 = vmatpush1.msra.mxu0 %v261
      %500 = vmatprep.subr.mxu0 %v264
      %501 = vmatpush1.msra.mxu0 %v263
      %502 = vmatprep.subr.mxu0 %v266
      %503 = vmatpush1.msra.mxu0 %v265
      %504 = vmatprep.subr.mxu0 %v268
      %505 = vmatpush1.msra.mxu0 %v267
      %506 = vmatprep.subr.mxu0 %v270
      %507 = vmatpush1.msra.mxu0 %v269
      %508 = vmatprep.subr.mxu0 %v272
      %509 = vmatpush1.msra.mxu0 %v271
      %510 = vmatprep.subr.mxu0 %v274
      %511 = vmatpush1.msra.mxu0 %v273
      %512 = vmatprep.subr.mxu0 %v276
      %513 = vmatpush1.msra.mxu0 %v275
      %514 = vmatprep.subr.mxu0 %v278
      %515 = vmatpush1.msra.mxu0 %v277
      %516 = vmatprep.subr.mxu0 %v280
      %517 = vmatpush1.msra.mxu0 %v279
      %518 = vmatprep.subr.mxu0 %v282
      %519 = vmatpush1.msra.mxu0 %v281
      %520 = vmatprep.subr.mxu0 %v284
      %521 = vmatpush1.msra.mxu0 %v283
      %522 = vmatprep.subr.mxu0 %v286
      %523 = vmatpush1.msra.mxu0 %v285
      %524 = vmatprep.subr.mxu0 %v288
      %525 = vmatpush1.msra.mxu0 %v287
      %526 = vmatprep.subr.mxu0 %v290
      %527 = vmatpush1.msra.mxu0 %v289
      %528 = vmatprep.subr.mxu0 %v292
      %529 = vmatpush1.msra.mxu0 %v291
      %530 = vmatprep.subr.mxu0 %v294
      %531 = vmatpush1.msra.mxu0 %v293
      %532 = vmatprep.subr.mxu0 %v296
      %533 = vmatpush1.msra.mxu0 %v295
      %534 = vmatprep.subr.mxu0 %v298
      %535 = vmatpush1.msra.mxu0 %v297
      %536 = vmatprep.subr.mxu0 %v300
      %537 = vmatpush1.msra.mxu0 %v299
      %538 = vmatprep.subr.mxu0 %v302
      %539 = vmatpush1.msra.mxu0 %v301
      %540 = vmatprep.subr.mxu0 %v304
      %541 = vmatpush1.msra.mxu0 %v303
      %542 = vmatprep.subr.mxu0 %v306
      %543 = vmatpush1.msra.mxu0 %v305
      %544 = vmatprep.subr.mxu0 %v308
      %545 = vmatpush1.msra.mxu0 %v307
      %546 = vmatprep.subr.mxu0 %v310
      %547 = vmatpush1.msra.mxu0 %v309
      %548 = vmatprep.subr.mxu0 %v312
      %549 = vmatpush1.msra.mxu0 %v311
      %550 = vmatprep.subr.mxu0 %v314
      %551 = vmatpush1.msra.mxu0 %v313
      %552 = vmatprep.subr.mxu0 %v316
      %553 = vmatpush1.msra.mxu0 %v315
      %554 = vmatprep.subr.mxu0 %v318
      %555 = vmatpush1.msra.mxu0 %v317
      %556 = vmatprep.mubr.f32.mxu0 %v476
      %557 = vmatmul.mubr.f32.gmra.mrb[0].mxu0 %v468
      %v558 = vpop.f32.mrb[0].mxu0
      %v559 = vadd.f32 %v452, %v558
      %v560 = vpop.f32.mrb[0].mxu0
      %v561 = vadd.f32 %v456, %v560
      %562 = vdwg.mxu0
      %563 = vmatprep.subr.mxu0 %v320
      %564 = vmatpush1.msra.mxu0 %v319
      %565 = vmatprep.subr.mxu0 %v322
      %566 = vmatpush1.msra.mxu0 %v321
      %567 = vmatprep.subr.mxu0 %v324
      %568 = vmatpush1.msra.mxu0 %v323
      %569 = vmatprep.subr.mxu0 %v326
      %570 = vmatpush1.msra.mxu0 %v325
      %571 = vmatprep.subr.mxu0 %v328
      %572 = vmatpush1.msra.mxu0 %v327
      %573 = vmatprep.subr.mxu0 %v330
      %574 = vmatpush1.msra.mxu0 %v329
      %575 = vmatprep.subr.mxu0 %v332
      %576 = vmatpush1.msra.mxu0 %v331
      %577 = vmatprep.subr.mxu0 %v334
      %578 = vmatpush1.msra.mxu0 %v333
      %579 = vmatprep.subr.mxu0 %v336
      %580 = vmatpush1.msra.mxu0 %v335
      %581 = vmatprep.subr.mxu0 %v338
      %582 = vmatpush1.msra.mxu0 %v337
      %583 = vmatprep.subr.mxu0 %v340
      %584 = vmatpush1.msra.mxu0 %v339
      %585 = vmatprep.subr.mxu0 %v342
      %586 = vmatpush1.msra.mxu0 %v341
      %587 = vmatprep.subr.mxu0 %v344
      %588 = vmatpush1.msra.mxu0 %v343
      %589 = vmatprep.subr.mxu0 %v346
      %590 = vmatpush1.msra.mxu0 %v345
      %591 = vmatprep.subr.mxu0 %v348
      %592 = vmatpush1.msra.mxu0 %v347
      %593 = vmatprep.subr.mxu0 %v350
      %594 = vmatpush1.msra.mxu0 %v349
      %595 = vmatprep.subr.mxu0 %v352
      %596 = vmatpush1.msra.mxu0 %v351
      %597 = vmatprep.subr.mxu0 %v354
      %598 = vmatpush1.msra.mxu0 %v353
      %599 = vmatprep.subr.mxu0 %v356
      %600 = vmatpush1.msra.mxu0 %v355
      %601 = vmatprep.subr.mxu0 %v358
      %602 = vmatpush1.msra.mxu0 %v357
      %603 = vmatprep.subr.mxu0 %v360
      %604 = vmatpush1.msra.mxu0 %v359
      %605 = vmatprep.subr.mxu0 %v362
      %606 = vmatpush1.msra.mxu0 %v361
      %607 = vmatprep.subr.mxu0 %v364
      %608 = vmatpush1.msra.mxu0 %v363
      %609 = vmatprep.subr.mxu0 %v366
      %610 = vmatpush1.msra.mxu0 %v365
      %611 = vmatprep.subr.mxu0 %v368
      %612 = vmatpush1.msra.mxu0 %v367
      %613 = vmatprep.subr.mxu0 %v370
      %614 = vmatpush1.msra.mxu0 %v369
      %615 = vmatprep.subr.mxu0 %v372
      %616 = vmatpush1.msra.mxu0 %v371
      %617 = vmatprep.subr.mxu0 %v374
      %618 = vmatpush1.msra.mxu0 %v373
      %619 = vmatprep.subr.mxu0 %v376
      %620 = vmatpush1.msra.mxu0 %v375
      %621 = vmatprep.subr.mxu0 %v378
      %622 = vmatpush1.msra.mxu0 %v377
      %623 = vmatprep.subr.mxu0 %v380
      %624 = vmatpush1.msra.mxu0 %v379
      %625 = vmatprep.subr.mxu0 %v382
      %626 = vmatpush1.msra.mxu0 %v381
      %627 = vmatprep.mubr.f32.mxu0 %v477
      %628 = vmatmul.mubr.f32.gmra.mrb[0].mxu0 %v475
      %v629 = vpop.f32.mrb[0].mxu0
      %v630 = vadd.f32 %v559, %v629
      %v631 = vpop.f32.mrb[0].mxu0
      %v632 = vadd.f32 %v561, %v631
      %633 = vdwg.mxu0
      %634 = vmatprep.subr.mxu0 %v384
      %635 = vmatpush1.msra.mxu0 %v383
      %636 = vmatprep.subr.mxu0 %v386
      %637 = vmatpush1.msra.mxu0 %v385
      %638 = vmatprep.subr.mxu0 %v388
      %639 = vmatpush1.msra.mxu0 %v387
      %640 = vmatprep.subr.mxu0 %v390
      %641 = vmatpush1.msra.mxu0 %v389
      %642 = vmatprep.subr.mxu0 %v392
      %643 = vmatpush1.msra.mxu0 %v391
      %644 = vmatprep.subr.mxu0 %v394
      %645 = vmatpush1.msra.mxu0 %v393
      %646 = vmatprep.subr.mxu0 %v396
      %647 = vmatpush1.msra.mxu0 %v395
      %648 = vmatprep.subr.mxu0 %v398
      %649 = vmatpush1.msra.mxu0 %v397
      %650 = vmatprep.subr.mxu0 %v400
      %651 = vmatpush1.msra.mxu0 %v399
      %652 = vmatprep.subr.mxu0 %v402
      %653 = vmatpush1.msra.mxu0 %v401
      %654 = vmatprep.subr.mxu0 %v404
      %655 = vmatpush1.msra.mxu0 %v403
      %656 = vmatprep.subr.mxu0 %v406
      %657 = vmatpush1.msra.mxu0 %v405
      %658 = vmatprep.subr.mxu0 %v408
      %659 = vmatpush1.msra.mxu0 %v407
      %660 = vmatprep.subr.mxu0 %v410
      %661 = vmatpush1.msra.mxu0 %v409
      %662 = vmatprep.subr.mxu0 %v412
      %663 = vmatpush1.msra.mxu0 %v411
      %664 = vmatprep.subr.mxu0 %v414
      %665 = vmatpush1.msra.mxu0 %v413
      %666 = vmatprep.subr.mxu0 %v416
      %667 = vmatpush1.msra.mxu0 %v415
      %668 = vmatprep.subr.mxu0 %v418
      %669 = vmatpush1.msra.mxu0 %v417
      %670 = vmatprep.subr.mxu0 %v420
      %671 = vmatpush1.msra.mxu0 %v419
      %672 = vmatprep.subr.mxu0 %v422
      %673 = vmatpush1.msra.mxu0 %v421
      %674 = vmatprep.subr.mxu0 %v424
      %675 = vmatpush1.msra.mxu0 %v423
      %676 = vmatprep.subr.mxu0 %v426
      %677 = vmatpush1.msra.mxu0 %v425
      %678 = vmatprep.subr.mxu0 %v428
      %679 = vmatpush1.msra.mxu0 %v427
      %680 = vmatprep.subr.mxu0 %v430
      %681 = vmatpush1.msra.mxu0 %v429
      %682 = vmatprep.subr.mxu0 %v432
      %683 = vmatpush1.msra.mxu0 %v431
      %684 = vmatprep.subr.mxu0 %v434
      %685 = vmatpush1.msra.mxu0 %v433
      %686 = vmatprep.subr.mxu0 %v436
      %687 = vmatpush1.msra.mxu0 %v435
      %688 = vmatprep.subr.mxu0 %v438
      %689 = vmatpush1.msra.mxu0 %v437
      %690 = vmatprep.subr.mxu0 %v440
      %691 = vmatpush1.msra.mxu0 %v439
      %692 = vmatprep.subr.mxu0 %v442
      %693 = vmatpush1.msra.mxu0 %v441
      %694 = vmatprep.subr.mxu0 %v444
      %695 = vmatpush1.msra.mxu0 %v443
      %696 = vmatprep.subr.mxu0 %v446
      %697 = vmatpush1.msra.mxu0 %v445
      %698 = vmatprep.mubr.f32.mxu0 %v485
      %699 = vmatmul.mubr.f32.gmra.mrb[0].mxu0 %v484
      %v700 = vpop.f32.mrb[0].mxu0
      %v701 = vadd.f32 %v630, %v700
      %v702 = vpop.f32.mrb[0].mxu0
      %v703 = vadd.f32 %v632, %v702
      %704 = vdwg.mxu0
      %v705 = vmax.f32 %v701, 0.0
      %v706 = vmax.f32 %v703, 0.0
      %v707 = vld [vmem:[#allocation8] sm:$0xff]
      %v708 = vld [vmem:[#allocation8 + $0x8] sm:$0xff]
      %v709 = vld [vmem:[#allocation8 + $0x10] sm:$0xff]
      %v710 = vld [vmem:[#allocation8 + $0x18] sm:$0xff]
      %v711 = vld [vmem:[#allocation8 + $0x20] sm:$0xff]
      %v712 = vld [vmem:[#allocation8 + $0x28] sm:$0xff]
      %v713 = vld [vmem:[#allocation8 + $0x30] sm:$0xff]
      %v714 = vld [vmem:[#allocation8 + $0x38] sm:$0xff]
      %v715 = vld [vmem:[#allocation8 + $0x40] sm:$0xff]
      %v716 = vld [vmem:[#allocation8 + $0x48] sm:$0xff]
      %v717 = vld [vmem:[#allocation8 + $0x50] sm:$0xff]
      %v718 = vld [vmem:[#allocation8 + $0x58] sm:$0xff]
      %v719 = vld [vmem:[#allocation8 + $0x60] sm:$0xff]
      %v720 = vld [vmem:[#allocation8 + $0x68] sm:$0xff]
      %v721 = vld [vmem:[#allocation8 + $0x70] sm:$0xff]
      %v722 = vld [vmem:[#allocation8 + $0x78] sm:$0xff]
      %v723 = vld [vmem:[#allocation8 + $0x80] sm:$0xff]
      %v724 = vld [vmem:[#allocation8 + $0x88] sm:$0xff]
      %v725 = vld [vmem:[#allocation8 + $0x90] sm:$0xff]
      %v726 = vld [vmem:[#allocation8 + $0x98] sm:$0xff]
      %v727 = vld [vmem:[#allocation8 + $0xa0] sm:$0xff]
      %v728 = vld [vmem:[#allocation8 + $0xa8] sm:$0xff]
      %v729 = vld [vmem:[#allocation8 + $0xb0] sm:$0xff]
      %v730 = vld [vmem:[#allocation8 + $0xb8] sm:$0xff]
      %v731 = vld [vmem:[#allocation8 + $0xc0] sm:$0xff]
      %v732 = vld [vmem:[#allocation8 + $0xc8] sm:$0xff]
      %v733 = vld [vmem:[#allocation8 + $0xd0] sm:$0xff]
      %v734 = vld [vmem:[#allocation8 + $0xd8] sm:$0xff]
      %v735 = vld [vmem:[#allocation8 + $0xe0] sm:$0xff]
      %v736 = vld [vmem:[#allocation8 + $0xe8] sm:$0xff]
      %v737 = vld [vmem:[#allocation8 + $0xf0] sm:$0xff]
      %v738 = vld [vmem:[#allocation8 + $0xf8] sm:$0xff]
      %v739 = vld [vmem:[%s4] sm:$0x1]
      %v741 = vlaneseq
      %v742 = vshrl.u32 %v741, 7
      %v743 = vsub.s32 0, %v742
      %v744 = vrot.slane %v739, %v743
      %746 = vmatprep.subr.mxu0 0.0
      %747 = vmatpush1.msra.mxu0 %v707
      %748 = vmatprep.subr.mxu0 0.0
      %749 = vmatpush1.msra.mxu0 %v708
      %750 = vmatprep.subr.mxu0 0.0
      %751 = vmatpush1.msra.mxu0 %v709
      %752 = vmatprep.subr.mxu0 0.0
      %753 = vmatpush1.msra.mxu0 %v710
      %754 = vmatprep.subr.mxu0 0.0
      %755 = vmatpush1.msra.mxu0 %v711
      %756 = vmatprep.subr.mxu0 0.0
      %757 = vmatpush1.msra.mxu0 %v712
      %758 = vmatprep.subr.mxu0 0.0
      %759 = vmatpush1.msra.mxu0 %v713
      %760 = vmatprep.subr.mxu0 0.0
      %761 = vmatpush1.msra.mxu0 %v714
      %762 = vmatprep.subr.mxu0 0.0
      %763 = vmatpush1.msra.mxu0 %v715
      %764 = vmatprep.subr.mxu0 0.0
      %765 = vmatpush1.msra.mxu0 %v716
      %766 = vmatprep.subr.mxu0 0.0
      %767 = vmatpush1.msra.mxu0 %v717
      %768 = vmatprep.subr.mxu0 0.0
      %769 = vmatpush1.msra.mxu0 %v718
      %770 = vmatprep.subr.mxu0 0.0
      %771 = vmatpush1.msra.mxu0 %v719
      %772 = vmatprep.subr.mxu0 0.0
      %773 = vmatpush1.msra.mxu0 %v720
      %774 = vmatprep.subr.mxu0 0.0
      %775 = vmatpush1.msra.mxu0 %v721
      %776 = vmatprep.subr.mxu0 0.0
      %777 = vmatpush1.msra.mxu0 %v722
      %778 = vmatprep.subr.mxu0 0.0
      %779 = vmatpush1.msra.mxu0 %v723
      %780 = vmatprep.subr.mxu0 0.0
      %781 = vmatpush1.msra.mxu0 %v724
      %782 = vmatprep.subr.mxu0 0.0
      %783 = vmatpush1.msra.mxu0 %v725
      %784 = vmatprep.subr.mxu0 0.0
      %785 = vmatpush1.msra.mxu0 %v726
      %786 = vmatprep.subr.mxu0 0.0
      %787 = vmatpush1.msra.mxu0 %v727
      %788 = vmatprep.subr.mxu0 0.0
      %789 = vmatpush1.msra.mxu0 %v728
      %790 = vmatprep.subr.mxu0 0.0
      %791 = vmatpush1.msra.mxu0 %v729
      %792 = vmatprep.subr.mxu0 0.0
      %793 = vmatpush1.msra.mxu0 %v730
      %794 = vmatprep.subr.mxu0 0.0
      %795 = vmatpush1.msra.mxu0 %v731
      %796 = vmatprep.subr.mxu0 0.0
      %797 = vmatpush1.msra.mxu0 %v732
      %798 = vmatprep.subr.mxu0 0.0
      %799 = vmatpush1.msra.mxu0 %v733
      %800 = vmatprep.subr.mxu0 0.0
      %801 = vmatpush1.msra.mxu0 %v734
      %802 = vmatprep.subr.mxu0 0.0
      %803 = vmatpush1.msra.mxu0 %v735
      %804 = vmatprep.subr.mxu0 0.0
      %805 = vmatpush1.msra.mxu0 %v736
      %806 = vmatprep.subr.mxu0 0.0
      %807 = vmatpush1.msra.mxu0 %v737
      %808 = vmatprep.subr.mxu0 0.0
      %809 = vmatpush1.msra.mxu0 %v738
      %810 = vmatprep.mubr.f32.mxu0 %v706
      %811 = vmatmul.mubr.f32.gmra.mrb[0].mxu0 %v705
      %v812 = vpop.f32.mrb[0].mxu0
      %v813 = vadd.f32 %v744, %v812
      %v814 = vpop.f32.mrb[0].mxu0
      %815 = vdwg.mxu0
      %816 = vst [vmem:[#allocation9] sm:$0x3] %v813
    $region41: #{tpu_custom_call.1} parent=1 // pred_fallthru
      _
    // Predicated region
    $region42: #{tpu_custom_call.1} parent=1 // pred_check
      _
    $region43: #{tpu_custom_call.1} parent=1 // pred_check_branch
      %818 = sbr.rel (0) target = $region45
    $region44: #{tpu_custom_call.1} parent=1 // pred_region
      %s820 = ssub.s32 32, 32
      %821 = vsyncadd [#allocation5], %s820
      %s823 = sshll.u32 [#allocation9], 4
      %s824 = int_to_ptr.vmem [resolvable:$true] %s823
      %826 = dma.vmem_to_hbm [thread:$0]  %s824, 32, %s5, [#allocation5]
    $region45: #{tpu_custom_call.1} parent=1 // pred_fallthru
      _
    // Predicated region
    $region46: #{tpu_custom_call.1} parent=1 // pred_check
      _
    $region47: #{tpu_custom_call.1} parent=1 // pred_check_branch
      %828 = sbr.rel (0) target = $region49
    $region48: #{tpu_custom_call.1} parent=1 // pred_region
      %829 = dma.done [#allocation5], 32
    $region49: #{tpu_custom_call.1} parent=1 // pred_fallthru
      _
    %830 = vsyncpa [#allocation4], 1
    %831 = vsyncpa [#allocation7], 1
    %832 = vsyncpa [#allocation5], 1

</llo_original>
